<compile_context>
chip_gen: v5e
topology: v5e:2x2
jax: 0.10.0
libtpu: 0.0.40
codegen_flags: <defaults>
</compile_context>

<pallas_src>
import functools

import jax
import jax.numpy as jnp
from jax.experimental import pallas as pl
from jax.experimental.pallas import tpu as pltpu


_VMEM_LIMIT = 32 * 1024 * 1024        # safe on v5e/v6e/v7x scoped-VMEM budgets
_W_BLOCK_BUDGET = 10 * 1024 * 1024    # max bytes for a resident weight column block


def _round_up(x, m):
    return ((x + m - 1) // m) * m


def _pick_tn(K, N, elem_bytes):
    """Largest column tile dividing N whose (K, tn) weight block fits the budget.
    For d_model-class K/N the whole weight fits and tn == N (pure 1-D row grid)."""
    if K * N * elem_bytes <= _W_BLOCK_BUDGET or N < 256:
        return N
    best = N
    for cand in range(128, N, 128):
        if N % cand == 0 and K * cand * elem_bytes <= _W_BLOCK_BUDGET:
            best = cand
    return best


# ----------------------------------------------------------------------------
# Tiled linear:  y = x @ w + b   (bf16 MXU matmul, f32 accumulation, full-K depth)
# ----------------------------------------------------------------------------
def _linear_kernel(x_ref, w_ref, b_ref, o_ref):
    o_ref[...] = (
        jnp.dot(x_ref[...], w_ref[...], preferred_element_type=jnp.float32)
        + b_ref[...]
    ).astype(o_ref.dtype)


def _linear(x2d, w, b, *, out_dtype, compute_dtype=jnp.bfloat16, tm=512):
    L, K = x2d.shape
    Kw, N = w.shape
    assert K == Kw

    tm = min(tm, _round_up(L, 8))                      # multiple of 8 sublanes
    tn = _pick_tn(K, N, jnp.dtype(compute_dtype).itemsize)
    gm, gn = pl.cdiv(L, tm), N // tn                   # ragged L edge handled by Pallas masking

    xc = x2d.astype(compute_dtype)
    wc = w.astype(compute_dtype)
    b2 = b.astype(jnp.float32).reshape(1, N)

    return pl.pallas_call(
        _linear_kernel,
        out_shape=jax.ShapeDtypeStruct((L, N), out_dtype),
        grid=(gm, gn),
        in_specs=[
            pl.BlockSpec((tm, K), lambda i, j: (i, 0)),   # x streamed once over rows
            pl.BlockSpec((K, tn), lambda i, j: (0, j)),   # weight block (resident when gn == 1)
            pl.BlockSpec((1, tn), lambda i, j: (0, j)),
        ],
        out_specs=pl.BlockSpec((tm, tn), lambda i, j: (i, j)),
        compiler_params=pltpu.CompilerParams(
            dimension_semantics=("parallel", "parallel"),
            vmem_limit_bytes=_VMEM_LIMIT,
        ),
    )(xc, wc, b2)


# ----------------------------------------------------------------------------
# Fused cross-attention + output projection (mask=None path).
#   q: (H, Lq, D), k/v: (H, Lk, D) head-major; Wp: (C, C), bp: (1, C)
#   output: (Lq, C) lane-dense (already projected).
# ----------------------------------------------------------------------------
def _attn_proj_kernel(q_ref, k_ref, v_ref, wp_ref, bp_ref, o_ref, acc_ref,
                      *, num_heads, head_dim):
    acc_ref[...] = jnp.zeros_like(acc_ref)

    def head_body(h, carry):
        q = q_ref[h]                                  # (tq, D)  bf16, already scaled via Wq
        k = k_ref[h]                                  # (Lk, D)  bf16
        v = v_ref[h]                                  # (Lk, D)  bf16

        # scores = q @ k^T, contracting the head dim without an explicit transpose.
        s = jax.lax.dot_general(
            q, k, (((1,), (1,)), ((), ())),
            preferred_element_type=jnp.float32,
        )                                             # (tq, Lk) f32

        m = jnp.max(s, axis=-1, keepdims=True)
        p = jnp.exp(s - m)
        denom = jnp.sum(p, axis=-1, keepdims=True)
        attn = (p * pl.reciprocal(denom, approx=True)).astype(v.dtype)

        o_h = jnp.dot(attn, v, preferred_element_type=jnp.float32)   # (tq, D) f32

        # Fused output projection: accumulate o_h @ Wp[h*D:(h+1)*D, :].
        off = pl.multiple_of(h * head_dim, head_dim)
        wp_h = wp_ref[pl.ds(off, head_dim), :]                        # (D, C) bf16
        acc_ref[...] += jnp.dot(o_h.astype(wp_h.dtype), wp_h,
                                preferred_element_type=jnp.float32)   # (tq, C) f32
        return carry

    jax.lax.fori_loop(0, num_heads, head_body, 0, unroll=2)
    o_ref[...] = (acc_ref[...] + bp_ref[...]).astype(o_ref.dtype)


def _attention_proj(qh, kh, vh, wp, bp, *, out_dtype,
                    compute_dtype=jnp.bfloat16, tq=256):
    H, Lq, D = qh.shape
    _, Lk, _ = kh.shape
    C = H * D

    tq = min(tq, _round_up(Lq, 8))
    grid = (pl.cdiv(Lq, tq),)                          # ragged edge masked by Pallas

    kernel = functools.partial(_attn_proj_kernel, num_heads=H, head_dim=D)
    return pl.pallas_call(
        kernel,
        out_shape=jax.ShapeDtypeStruct((Lq, C), out_dtype),
        grid=grid,
        in_specs=[
            pl.BlockSpec((H, tq, D), lambda i: (0, i, 0)),   # query tile
            pl.BlockSpec((H, Lk, D), lambda i: (0, 0, 0)),   # full K slab, resident
            pl.BlockSpec((H, Lk, D), lambda i: (0, 0, 0)),   # full V slab, resident
            pl.BlockSpec((C, C), lambda i: (0, 0)),          # Wp resident
            pl.BlockSpec((1, C), lambda i: (0, 0)),          # bp resident
        ],
        out_specs=pl.BlockSpec((tq, C), lambda i: (i, 0)),   # lane-dense output slab
        scratch_shapes=[pltpu.VMEM((tq, C), jnp.float32)],
        compiler_params=pltpu.CompilerParams(
            dimension_semantics=("parallel",),
            vmem_limit_bytes=_VMEM_LIMIT,
        ),
    )(qh.astype(compute_dtype), kh.astype(compute_dtype), vh.astype(compute_dtype),
      wp.astype(compute_dtype), bp.astype(jnp.float32).reshape(1, C))


# ----------------------------------------------------------------------------
# Module wrapper
# ----------------------------------------------------------------------------
def init_params(key, d_model):
    ks = jax.random.split(key, 6)
    s = 0.02
    return {
        # stored as (in, out) so kernels compute x @ W
        "wq": jax.random.normal(ks[0], (d_model, d_model), jnp.float32) * s,
        "bq": jax.random.normal(ks[1], (d_model,), jnp.float32) * s,
        "wkv": jax.random.normal(ks[2], (d_model, 2 * d_model), jnp.float32) * s,
        "bkv": jax.random.normal(ks[3], (2 * d_model,), jnp.float32) * s,
        "wp": jax.random.normal(ks[4], (d_model, d_model), jnp.float32) * s,
        "bp": jax.random.normal(ks[5], (d_model,), jnp.float32) * s,
    }


def quantized_mhca_forward(params, x, cond, num_heads, *,
                           compute_dtype=jnp.bfloat16, out_dtype=jnp.bfloat16):
    B, N, C = x.shape
    Bc, M, Cc = cond.shape
    assert Cc == C and Bc == B and C % num_heads == 0
    H = num_heads
    D = C // H
    Lq, Lk = B * N, B * M

    x2d = x.reshape(Lq, C)
    c2d = cond.reshape(Lk, C)

    # Fold the 1/sqrt(D) attention scale into the Q projection (weight-side, free).
    scale = 1.0 / (D ** 0.5)
    wq = params["wq"] * scale
    bq = params["bq"] * scale

    # Q projection (full-K / full-N, 1-D row grid) and FUSED KV projection.
    q2d = _linear(x2d, wq, bq, out_dtype=compute_dtype,
                  compute_dtype=compute_dtype)                         # (Lq, C)
    kv2d = _linear(c2d, params["wkv"], params["bkv"],
                   out_dtype=compute_dtype, compute_dtype=compute_dtype)  # (Lk, 2C)

    # Head-major views for the attention kernel (leading-axis head indexing in-kernel).
    qh = q2d.reshape(Lq, H, D).transpose(1, 0, 2)                      # (H, Lq, D)
    kvh = kv2d.reshape(Lk, 2, H, D)
    kh = kvh[:, 0].transpose(1, 0, 2)                                  # (H, Lk, D)
    vh = kvh[:, 1].transpose(1, 0, 2)                                  # (H, Lk, D)

    # mask=None path: every query token attends to ALL key tokens of the flattened batch.
    # Attention + output projection fused in one kernel -> (Lq, C).
    out2d = _attention_proj(qh, kh, vh, params["wp"], params["bp"],
                            out_dtype=out_dtype, compute_dtype=compute_dtype)
    return out2d.reshape(B, N, C)


# Pure-JAX f32 reference for correctness checking.
def _reference(params, x, cond, num_heads):
    B, N, C = x.shape
    _, M, _ = cond.shape
    H = num_heads
    D = C // H
    q = x.reshape(B * N, C) @ params["wq"] + params["bq"]
    kv = cond.reshape(B * M, C) @ params["wkv"] + params["bkv"]
    qh = q.reshape(B * N, H, D).transpose(1, 0, 2) / (D ** 0.5)
    kvh = kv.reshape(B * M, 2, H, D)
    kh = kvh[:, 0].transpose(1, 0, 2)
    vh = kvh[:, 1].transpose(1, 0, 2)
    s = jnp.einsum("hqd,hkd->hqk", qh, kh)
    a = jax.nn.softmax(s, axis=-1)
    o = jnp.einsum("hqk,hkd->hqd", a, vh)
    o = o.transpose(1, 0, 2).reshape(B * N, C)
    return (o @ params["wp"] + params["bp"]).reshape(B, N, C)


if __name__ == "__main__":
    # Small shapes consistent with the module's forward.
    B, N, M = 2, 16, 8          # batch, image tokens, text tokens
    d_model, num_heads = 32, 4  # head_dim = 8

    key = jax.random.PRNGKey(0)
    kp, kx, kc = jax.random.split(key, 3)
    params = init_params(kp, d_model)
    x = jax.random.normal(kx, (B, N, d_model), jnp.float32)
    cond = jax.random.normal(kc, (B, M, d_model), jnp.float32)

    out = quantized_mhca_forward(params, x, cond, num_heads)
    out = jax.block_until_ready(out)

    ref = _reference(params, x, cond, num_heads)
    assert out.shape == (B, N, d_model)
    err = float(jnp.max(jnp.abs(out.astype(jnp.float32) - ref)))
    scale = float(jnp.max(jnp.abs(ref)))
    # bf16 matmuls with f32 accumulation (+ bf16 writeback): allow bf16-level relative error.
    assert err <= 5e-3 + 2e-2 * scale, f"mismatch vs reference: err={err}, scale={scale}"

    print("KERNEL_OK")
</pallas_src>

<mosaic_0001>
module attributes {stable_mosaic.version = 11 : i64} {
  func.func @_linear_kernel(%arg0: i32, %arg1: i32, %arg2: memref<32x32xbf16, #tpu.memory_space<vmem>>, %arg3: memref<32x32xbf16, #tpu.memory_space<vmem>>, %arg4: memref<1x32xf32, #tpu.memory_space<vmem>>, %arg5: memref<32x32xbf16, #tpu.memory_space<vmem>>) attributes {dimension_semantics = [#tpu.dimension_semantics<parallel>, #tpu.dimension_semantics<parallel>], iteration_bounds = array<i64: 1, 1>, scalar_prefetch = 0 : i64, scratch_operands = 0 : i64, tpu.core_type = #tpu.core_type<tc>, window_params = [{transform_indices = @transform_0, window_bounds = array<i64: 32, 32>}, {transform_indices = @transform_1, window_bounds = array<i64: 32, 32>}, {transform_indices = @transform_2, window_bounds = array<i64: 1, 32>}, {transform_indices = @transform_3, window_bounds = array<i64: 32, 32>}]} {
    %c0 = arith.constant 0 : index
    %c0_0 = arith.constant 0 : index
    %0 = vector.load %arg2[%c0, %c0_0] : memref<32x32xbf16, #tpu.memory_space<vmem>>, vector<32x32xbf16>
    %c0_1 = arith.constant 0 : index
    %c0_2 = arith.constant 0 : index
    %1 = vector.load %arg3[%c0_1, %c0_2] : memref<32x32xbf16, #tpu.memory_space<vmem>>, vector<32x32xbf16>
    %cst = arith.constant dense<0.000000e+00> : vector<32x32xf32>
    %2 = tpu.matmul %0, %1, %cst {dimension_numbers = #tpu.dot_dimension_numbers<[1], [0], [0], [1], [0, 0, 1, 1], [], []>} : vector<32x32xbf16>, vector<32x32xbf16>, vector<32x32xf32> -> vector<32x32xf32>
    %c0_3 = arith.constant 0 : index
    %c0_4 = arith.constant 0 : index
    %3 = vector.load %arg4[%c0_3, %c0_4] : memref<1x32xf32, #tpu.memory_space<vmem>>, vector<1x32xf32>
    %4 = vector.broadcast %3 : vector<1x32xf32> to vector<32x32xf32>
    %5 = arith.addf %2, %4 : vector<32x32xf32>
    %6 = arith.truncf %5 : vector<32x32xf32> to vector<32x32xbf16>
    %c0_5 = arith.constant 0 : index
    %c0_6 = arith.constant 0 : index
    %7 = vector.load %arg5[%c0_5, %c0_6] : memref<32x32xbf16, #tpu.memory_space<vmem>>, vector<32x32xbf16>
    tpu.vector_store %arg5[%c0_5, %c0_6], %6 {strides = array<i32>} : memref<32x32xbf16, #tpu.memory_space<vmem>>, vector<32x32xbf16>,
    return
  }
  func.func @transform_0(%arg0: i32, %arg1: i32) -> (i32, i32) {
    %c0_i32 = arith.constant 0 : i32
    %c0_i32_0 = arith.constant 0 : i32
    return %arg0, %c0_i32 : i32, i32
  }
  func.func @transform_1(%arg0: i32, %arg1: i32) -> (i32, i32) {
    %c0_i32 = arith.constant 0 : i32
    %c0_i32_0 = arith.constant 0 : i32
    return %c0_i32, %arg1 : i32, i32
  }
  func.func @transform_2(%arg0: i32, %arg1: i32) -> (i32, i32) {
    %c0_i32 = arith.constant 0 : i32
    %c0_i32_0 = arith.constant 0 : i32
    return %c0_i32, %arg1 : i32, i32
  }
  func.func @transform_3(%arg0: i32, %arg1: i32) -> (i32, i32) {
    %c0_i32 = arith.constant 0 : i32
    return %arg0, %arg1 : i32, i32
  }
}

</mosaic_0001>

<llo_original>
// kernel: tpu_custom_call.1
$region0: #{tpu_custom_call.1}
  #allocation0 [shape = 'u32[]', space=smem, size = 0x4, offset = 0x4, fixed_abs, tag = 'smem constant byte address 0x4 - core index']
  #allocation1 [shape = 'u32[72,128]{1,0:T(1,128)}', space=vmem, size = 0x9000, scoped, tag = 'internal scratch']
  %s0 = inlined_call_operand.hbm [shape: bf16[32,32], index: 0, kind: input, shape index: {}]
  %s1 = inlined_call_operand.hbm [shape: bf16[32,32], index: 1, kind: input, shape index: {}]
  %s2 = inlined_call_operand.vmem [shape: f32[1,32], index: 2, kind: input, shape index: {}]
  %s3 = inlined_call_operand.hbm [shape: bf16[32,32], index: 3, kind: output, shape index: {}]
  %s4 = sld [smem:[#allocation0]]
  $region30: #{tpu_custom_call.1} parent=0
    _
  %s6 = ssub.s32 1, %s4
  %s7 = scalar_select 0, %s6, %s4
  $region1: #{tpu_custom_call.1} parent=0
    #allocation2 [shape = 'u8[8192]{0}', space=vmem, size = 0x2000, scoped, tag = 'input window, operand 0, single buffered']
    #allocation3 [shape = 's32[1]{0}', space=sflag, size = 0x4, scoped, tag = 'scoped memory for tpu_custom_call.1']
    #allocation4 [shape = 's32[1]{0}', space=sflag, size = 0x4, scoped, tag = 'scoped memory for tpu_custom_call.1']
    #allocation5 [shape = 'u8[8192]{0}', space=vmem, size = 0x2000, scoped, tag = 'input window, operand 1, single buffered']
    #allocation6 [shape = 's32[1]{0}', space=sflag, size = 0x4, scoped, tag = 'scoped memory for tpu_custom_call.1']
    #allocation7 [shape = 'u8[8192]{0}', space=vmem, size = 0x2000, scoped, tag = 'output window, operand 0, single buffered']
    %8 = vsyncpa [#allocation3], 0
    %9 = vsyncpa [#allocation6], 0
    %10 = vsyncpa [#allocation4], 0
    // Predicated region
    $region2: #{tpu_custom_call.1} parent=1 // pred_check
      _
    $region3: #{tpu_custom_call.1} parent=1 // pred_check_branch
      %12 = sbr.rel (0) target = $region5
    $region4: #{tpu_custom_call.1} parent=1 // pred_region
      %14 = vsyncadd [#allocation3], 0
      %s15 = sshll.u32 %s0, 4
      %s16 = int_to_ptr.hbm [resolvable:$true] %s15
      %s17 = sshll.u32 [#allocation2], 4
      %s18 = int_to_ptr.vmem [resolvable:$true] %s17
      %23 = dma.hbm_to_vmem [thread:$0]  %s16, 256, %s18, [#allocation3], 64, 64, 4
    $region5: #{tpu_custom_call.1} parent=1 // pred_fallthru
      _
    // Predicated region
    $region6: #{tpu_custom_call.1} parent=1 // pred_check
      _
    $region7: #{tpu_custom_call.1} parent=1 // pred_check_branch
      %25 = sbr.rel (0) target = $region9
    $region8: #{tpu_custom_call.1} parent=1 // pred_region
      %27 = vsyncadd [#allocation6], 0
      %s28 = sshll.u32 %s1, 4
      %s29 = int_to_ptr.hbm [resolvable:$true] %s28
      %s30 = sshll.u32 [#allocation5], 4
      %s31 = int_to_ptr.vmem [resolvable:$true] %s30
      %36 = dma.hbm_to_vmem [thread:$0]  %s29, 256, %s31, [#allocation6], 64, 64, 4
    $region9: #{tpu_custom_call.1} parent=1 // pred_fallthru
      _
    // Predicated region
    $region10: #{tpu_custom_call.1} parent=1 // pred_check
      _
    $region11: #{tpu_custom_call.1} parent=1 // pred_check_branch
      %38 = sbr.rel (0) target = $region13
    $region12: #{tpu_custom_call.1} parent=1 // pred_region
      _
    $region13: #{tpu_custom_call.1} parent=1 // pred_fallthru
      _
    // Predicated region
    $region14: #{tpu_custom_call.1} parent=1 // pred_check
      _
    $region15: #{tpu_custom_call.1} parent=1 // pred_check_branch
      %40 = sbr.rel (0) target = $region17
    $region16: #{tpu_custom_call.1} parent=1 // pred_region
      %42 = dma.done [#allocation3], 256
    $region17: #{tpu_custom_call.1} parent=1 // pred_fallthru
      _
    // Predicated region
    $region18: #{tpu_custom_call.1} parent=1 // pred_check
      _
    $region19: #{tpu_custom_call.1} parent=1 // pred_check_branch
      %44 = sbr.rel (0) target = $region21
    $region20: #{tpu_custom_call.1} parent=1 // pred_region
      %46 = dma.done [#allocation6], 256
    $region21: #{tpu_custom_call.1} parent=1 // pred_fallthru
      _
    %v48 = vld [vmem:[#allocation2] sm:$0xf]
    %v49 = vld [vmem:[#allocation2 + $0x4] sm:$0xf]
    %v50 = vld [vmem:[#allocation2 + $0x8] sm:$0xf]
    %v51 = vld [vmem:[#allocation2 + $0xc] sm:$0xf]
    %v52 = vld [vmem:[#allocation5] sm:$0xf]
    %v53 = vld [vmem:[#allocation5 + $0x4] sm:$0xf]
    %v54 = vld [vmem:[#allocation5 + $0x8] sm:$0xf]
    %v55 = vld [vmem:[#allocation5 + $0xc] sm:$0xf]
    %v56 = vld [vmem:[%s2] sm:$0x1]
    %v58 = vperm.slane %v56, 0
    %v64 = vunpack.c.l.b16 %v48
    %v65 = vunpack.c.l.b16 %v49
    %v66 = vunpack.c.l.b16 %v50
    %v67 = vunpack.c.l.b16 %v51
    %v68 = vpack.c.b16 %v65, %v64
    %v69 = vpack.c.b16 %v67, %v66
    %v74 = vunpack.c.l.b16 %v52
    %v75 = vunpack.c.l.b16 %v53
    %v76 = vunpack.c.l.b16 %v54
    %v77 = vunpack.c.l.b16 %v55
    %v78 = vpack.c.b16 %v75, %v74
    %v79 = vpack.c.b16 %v77, %v76
    %vm82 = vcmask 261120
    %v84 = vsel %vm82, %v68, 0
    %v87 = vsel %vm82, %v69, 0
    %89 = vmatpush.bf16.msra.mxu0 0
    %90 = vmatpush.bf16.msra.mxu0 0
    %91 = vmatpush.bf16.msra.mxu0 0
    %92 = vmatpush.bf16.msra.mxu0 0
    %93 = vmatpush.bf16.msra.mxu0 0
    %94 = vmatpush.bf16.msra.mxu0 0
    %95 = vmatpush.bf16.msra.mxu0 %v79
    %96 = vmatpush.bf16.msra.mxu0 %v78
    %97 = vmatmul.bf16.gmra.mxu0 %v84
    %v98 = vpop.f32.mrf.mxu0
    %v99 = vadd.f32 %v58, %v98
    %v100 = vpop.f32.mrf.mxu0
    %v101 = vadd.f32 %v58, %v100
    %102 = vmatmul.bf16.gmra.mxu0 %v87
    %v103 = vpop.f32.mrf.mxu0
    %v104 = vadd.f32 %v58, %v103
    %v105 = vpop.f32.mrf.mxu0
    %v106 = vadd.f32 %v58, %v105
    %107 = vdwg.mxu0
    %v108 = vpack.c.bf16 %v99, %v99
    %v109 = vpack.c.bf16 %v101, %v101
    %v110 = vpack.c.bf16 %v104, %v104
    %v111 = vpack.c.bf16 %v106, %v106
    %vm112 = vcmask 257024
    %113 = vst.msk [vmem:[#allocation7] sm:$0xf] %vm112, %v108
    %114 = vst.msk [vmem:[#allocation7 + $0x4] sm:$0xf] %vm112, %v109
    %115 = vst.msk [vmem:[#allocation7 + $0x8] sm:$0xf] %vm112, %v110
    %116 = vst.msk [vmem:[#allocation7 + $0xc] sm:$0xf] %vm112, %v111
    // Predicated region
    $region22: #{tpu_custom_call.1} parent=1 // pred_check
      _
    $region23: #{tpu_custom_call.1} parent=1 // pred_check_branch
      %118 = sbr.rel (0) target = $region25
    $region24: #{tpu_custom_call.1} parent=1 // pred_region
      %120 = vsyncadd [#allocation4], 0
      %s121 = sshll.u32 [#allocation7], 4
      %s122 = int_to_ptr.vmem [resolvable:$true] %s121
      %s123 = sshll.u32 %s3, 4
      %s124 = int_to_ptr.hbm [resolvable:$true] %s123
      %129 = dma.vmem_to_hbm [thread:$0]  %s122, 256, %s124, [#allocation4], 64, 64, 4
    $region25: #{tpu_custom_call.1} parent=1 // pred_fallthru
      _
    // Predicated region
    $region26: #{tpu_custom_call.1} parent=1 // pred_check
      _
    $region27: #{tpu_custom_call.1} parent=1 // pred_check_branch
      %131 = sbr.rel (0) target = $region29
    $region28: #{tpu_custom_call.1} parent=1 // pred_region
      %133 = dma.done [#allocation4], 256
    $region29: #{tpu_custom_call.1} parent=1 // pred_fallthru
      _
    %134 = vsyncpa [#allocation3], 1
    %135 = vsyncpa [#allocation6], 1
    %136 = vsyncpa [#allocation4], 1

</llo_original>
